<compile_context>
chip_gen: v7x
topology: tpu7x:2x2x1
jax: 0.10.0
libtpu: 0.0.40
codegen_flags: <defaults>
</compile_context>

<pallas_src>
import functools

import jax
import jax.numpy as jnp
from jax import lax
from jax.experimental import pallas as pl
from jax.experimental.pallas import tpu as pltpu

EMB = 32              # embedding_dimensions
HID = 4 * EMB         # hidden width of the MLP (128)
PACK = 4              # tokens packed per 128-lane row
LANE = PACK * EMB     # 128
PHID = PACK * HID     # 512
SUB_ROWS = 512        # default in-kernel row sub-tile (bounds f32 `h` to ~1 MiB)


def _round_up(x, n):
    return ((x + n - 1) // n) * n


def _choose_tiles(md, tile_rows, sub_rows):
    """Pick (tmd, sub): dense rows per grid step / per in-kernel sub-step."""
    if md <= 8:
        return md, md                              # single tiny full-array block
    half = _round_up(-(-md // 2), 8)               # >=2 grid steps when possible (v7x megacore)
    tmd = min(tile_rows, half)
    if tmd >= sub_rows:
        tmd = (tmd // sub_rows) * sub_rows
        sub = sub_rows
    else:
        tmd = _round_up(tmd, 8)
        sub = tmd
    return tmd, sub


def _make_ffn_kernel(n_sub, sub):
    def kernel(x_ref, w1_ref, b1_ref, w2_ref, b2_ref, o_ref):
        # x_ref : (tmd, 128) f32    w1_ref: (128, 512) bf16   b1_ref: (1, 512) f32
        # w2_ref: (512, 128) bf16   b2_ref: (1, 128) f32      o_ref : (tmd, 128) f32
        w1 = w1_ref[...]
        b1 = b1_ref[...]
        w2 = w2_ref[...]
        b2 = b2_ref[...]

        def compute(x):
            h = jnp.dot(x.astype(jnp.bfloat16), w1,
                        preferred_element_type=jnp.float32)
            h = jnp.maximum(h + b1, 0.0)                       # ReLU (f32)
            y = jnp.dot(h.astype(jnp.bfloat16), w2,
                        preferred_element_type=jnp.float32)
            return y + b2

        if n_sub == 1:
            o_ref[...] = compute(x_ref[...]).astype(o_ref.dtype)
        else:
            def body(i, carry):
                r0 = pl.multiple_of(i * sub, sub)
                y = compute(x_ref[pl.ds(r0, sub), :])
                o_ref[pl.ds(r0, sub), :] = y.astype(o_ref.dtype)
                return carry
            lax.fori_loop(0, n_sub, body, 0, unroll=(n_sub <= 4))

    return kernel


def pack_params(w1, b1, w2, b2):
    """Build the block-diagonal packed weights ONCE; reuse across calls."""
    eye = jnp.eye(PACK, dtype=jnp.float32)
    w1_blk = jnp.kron(eye, w1.astype(jnp.float32)).astype(jnp.bfloat16)    # (128, 512)
    w2_blk = jnp.kron(eye, w2.astype(jnp.float32)).astype(jnp.bfloat16)    # (512, 128)
    b1_blk = jnp.tile(b1.reshape(1, HID).astype(jnp.float32), (1, PACK))   # (1, 512)
    b2_blk = jnp.tile(b2.reshape(1, EMB).astype(jnp.float32), (1, PACK))   # (1, 128)
    return w1_blk, b1_blk, w2_blk, b2_blk


@functools.partial(jax.jit, static_argnames=("tile_rows", "sub_rows"))
def feed_forward(x, packed, *, tile_rows=4096, sub_rows=SUB_ROWS):
    """x: (..., EMB) float32 -> same shape.  `packed` comes from pack_params()."""
    w1_blk, b1_blk, w2_blk, b2_blk = packed
    orig_shape = x.shape
    m = 1
    for d in orig_shape[:-1]:
        m *= d
    x2d = x.reshape(m, EMB)

    # Pad tokens only up to a multiple of PACK (<= 3 rows), never to a full tile.
    m4 = _round_up(m, PACK)
    if m4 != m:
        x2d = jnp.pad(x2d, ((0, m4 - m), (0, 0)))
    md = m4 // PACK
    x_dense = x2d.reshape(md, LANE)

    tmd, sub = _choose_tiles(md, tile_rows, sub_rows)
    n_sub = tmd // sub
    grid_m = pl.cdiv(md, tmd)     # ragged last block handled by edge masking

    out_dense = pl.pallas_call(
        _make_ffn_kernel(n_sub, sub),
        out_shape=jax.ShapeDtypeStruct((md, LANE), x.dtype),
        grid=(grid_m,),
        in_specs=[
            pl.BlockSpec((tmd, LANE), lambda i: (i, 0)),     # x tile (pipelined)
            pl.BlockSpec((LANE, PHID), lambda i: (0, 0)),    # W1 (resident)
            pl.BlockSpec((1, PHID), lambda i: (0, 0)),       # b1 (resident)
            pl.BlockSpec((PHID, LANE), lambda i: (0, 0)),    # W2 (resident)
            pl.BlockSpec((1, LANE), lambda i: (0, 0)),       # b2 (resident)
        ],
        out_specs=pl.BlockSpec((tmd, LANE), lambda i: (i, 0)),
        compiler_params=pltpu.CompilerParams(
            dimension_semantics=("parallel",),               # megacore-shardable
            vmem_limit_bytes=48 * 1024 * 1024,
        ),
    )(x_dense, w1_blk, b1_blk, w2_blk, b2_blk)

    out = out_dense.reshape(m4, EMB)
    if m4 != m:
        out = out[:m]
    return out.reshape(orig_shape)


def init_params(key):
    """Deterministic init mimicking nn.Linear default (U[-1/sqrt(fan_in), +])."""
    k1, k2, k3, k4 = jax.random.split(key, 4)
    lim1 = 1.0 / jnp.sqrt(jnp.float32(EMB))
    lim2 = 1.0 / jnp.sqrt(jnp.float32(HID))
    # PyTorch Linear weight is (out, in); stored transposed (in, out) for x @ W.
    w1 = jax.random.uniform(k1, (EMB, HID), jnp.float32, -lim1, lim1)
    b1 = jax.random.uniform(k2, (1, HID), jnp.float32, -lim1, lim1)
    w2 = jax.random.uniform(k3, (HID, EMB), jnp.float32, -lim2, lim2)
    b2 = jax.random.uniform(k4, (1, EMB), jnp.float32, -lim2, lim2)
    return w1, b1, w2, b2


def _reference(x, w1, b1, w2, b2):
    m = 1
    for d in x.shape[:-1]:
        m *= d
    x2 = x.reshape(m, EMB)
    h = jnp.maximum(jnp.dot(x2, w1, preferred_element_type=jnp.float32) + b1, 0.0)
    y = jnp.dot(h, w2, preferred_element_type=jnp.float32) + b2
    return y.reshape(x.shape)


if __name__ == "__main__":
    key = jax.random.PRNGKey(0)
    kx, kp, kx2, kx3 = jax.random.split(key, 4)
    w1, b1, w2, b2 = init_params(kp)
    packed = pack_params(w1, b1, w2, b2)

    # bf16 MXU inputs (f32 accumulation) -> loosened tolerance vs f32 reference.
    ATOL = 2e-2
    RTOL = 2e-2

    # Test 1: small batch/sequence consistent with the module (single block).
    B, T = 2, 8
    x = jax.random.normal(kx, (B, T, EMB), jnp.float32)
    y = jax.block_until_ready(feed_forward(x, packed))
    ref = _reference(x, w1, b1, w2, b2)
    assert y.shape == (B, T, EMB)
    assert jnp.allclose(y, ref, atol=ATOL, rtol=RTOL), "mismatch (single block)"

    # Test 2: multi-step grid with a ragged (masked) tail block AND the
    # in-kernel sub-tile fori_loop (80 tokens -> 20 dense rows, tmd=16, sub=8).
    x_big = jax.random.normal(kx2, (5, 16, EMB), jnp.float32)
    y_big = jax.block_until_ready(
        feed_forward(x_big, packed, tile_rows=16, sub_rows=8))
    ref_big = _reference(x_big, w1, b1, w2, b2)
    assert y_big.shape == x_big.shape
    assert jnp.allclose(y_big, ref_big, atol=ATOL, rtol=RTOL), "mismatch (tiled)"

    # Test 3: token count not a multiple of PACK (21 tokens -> 1-row pad path).
    x_odd = jax.random.normal(kx3, (3, 7, EMB), jnp.float32)
    y_odd = jax.block_until_ready(feed_forward(x_odd, packed))
    ref_odd = _reference(x_odd, w1, b1, w2, b2)
    assert y_odd.shape == x_odd.shape
    assert jnp.allclose(y_odd, ref_odd, atol=ATOL, rtol=RTOL), "mismatch (odd m)"

    print("KERNEL_OK")
</pallas_src>

<mosaic_0001>
module attributes {stable_mosaic.version = 11 : i64} {
  func.func @kernel(%arg0: i32, %arg1: memref<4x128xf32, #tpu.memory_space<vmem>>, %arg2: memref<128x512xbf16, #tpu.memory_space<vmem>>, %arg3: memref<1x512xf32, #tpu.memory_space<vmem>>, %arg4: memref<512x128xbf16, #tpu.memory_space<vmem>>, %arg5: memref<1x128xf32, #tpu.memory_space<vmem>>, %arg6: memref<4x128xf32, #tpu.memory_space<vmem>>) attributes {dimension_semantics = [#tpu.dimension_semantics<parallel>], iteration_bounds = array<i64: 1>, scalar_prefetch = 0 : i64, scratch_operands = 0 : i64, tpu.core_type = #tpu.core_type<tc>, window_params = [{transform_indices = @transform_0, window_bounds = array<i64: 4, 128>}, {pipeline_mode = #tpu.pipeline_mode<synchronous>, transform_indices = @transform_1, window_bounds = array<i64: 128, 512>}, {pipeline_mode = #tpu.pipeline_mode<synchronous>, transform_indices = @transform_2, window_bounds = array<i64: 1, 512>}, {pipeline_mode = #tpu.pipeline_mode<synchronous>, transform_indices = @transform_3, window_bounds = array<i64: 512, 128>}, {pipeline_mode = #tpu.pipeline_mode<synchronous>, transform_indices = @transform_4, window_bounds = array<i64: 1, 128>}, {transform_indices = @transform_5, window_bounds = array<i64: 4, 128>}]} {
    %c0 = arith.constant 0 : index
    %c0_0 = arith.constant 0 : index
    %0 = vector.load %arg2[%c0, %c0_0] : memref<128x512xbf16, #tpu.memory_space<vmem>>, vector<128x512xbf16>
    %c0_1 = arith.constant 0 : index
    %c0_2 = arith.constant 0 : index
    %1 = vector.load %arg3[%c0_1, %c0_2] : memref<1x512xf32, #tpu.memory_space<vmem>>, vector<1x512xf32>
    %c0_3 = arith.constant 0 : index
    %c0_4 = arith.constant 0 : index
    %2 = vector.load %arg4[%c0_3, %c0_4] : memref<512x128xbf16, #tpu.memory_space<vmem>>, vector<512x128xbf16>
    %c0_5 = arith.constant 0 : index
    %c0_6 = arith.constant 0 : index
    %3 = vector.load %arg5[%c0_5, %c0_6] : memref<1x128xf32, #tpu.memory_space<vmem>>, vector<1x128xf32>
    %c0_7 = arith.constant 0 : index
    %c0_8 = arith.constant 0 : index
    %4 = vector.load %arg1[%c0_7, %c0_8] : memref<4x128xf32, #tpu.memory_space<vmem>>, vector<4x128xf32>
    %5 = arith.truncf %4 : vector<4x128xf32> to vector<4x128xbf16>
    %cst = arith.constant dense<0.000000e+00> : vector<4x512xf32>
    %6 = tpu.matmul %5, %0, %cst {dimension_numbers = #tpu.dot_dimension_numbers<[1], [0], [0], [1], [0, 0, 1, 1], [], []>} : vector<4x128xbf16>, vector<128x512xbf16>, vector<4x512xf32> -> vector<4x512xf32>
    %7 = vector.broadcast %1 : vector<1x512xf32> to vector<4x512xf32>
    %8 = arith.addf %6, %7 : vector<4x512xf32>
    %cst_9 = arith.constant 0.000000e+00 : f32
    %9 = vector.broadcast %cst_9 : f32 to vector<4x512xf32>
    %10 = arith.maximumf %8, %9 : vector<4x512xf32>
    %11 = arith.truncf %10 : vector<4x512xf32> to vector<4x512xbf16>
    %cst_10 = arith.constant dense<0.000000e+00> : vector<4x128xf32>
    %12 = tpu.matmul %11, %2, %cst_10 {dimension_numbers = #tpu.dot_dimension_numbers<[1], [0], [0], [1], [0, 0, 1, 1], [], []>} : vector<4x512xbf16>, vector<512x128xbf16>, vector<4x128xf32> -> vector<4x128xf32>
    %13 = vector.broadcast %3 : vector<1x128xf32> to vector<4x128xf32>
    %14 = arith.addf %12, %13 : vector<4x128xf32>
    %c0_11 = arith.constant 0 : index
    %c0_12 = arith.constant 0 : index
    %15 = vector.load %arg6[%c0_11, %c0_12] : memref<4x128xf32, #tpu.memory_space<vmem>>, vector<4x128xf32>
    tpu.vector_store %arg6[%c0_11, %c0_12], %14 {strides = array<i32>} : memref<4x128xf32, #tpu.memory_space<vmem>>, vector<4x128xf32>,
    return
  }
  func.func @transform_0(%arg0: i32) -> (i32, i32) {
    %c0_i32 = arith.constant 0 : i32
    %c0_i32_0 = arith.constant 0 : i32
    return %arg0, %c0_i32 : i32, i32
  }
  func.func @transform_1(%arg0: i32) -> (i32, i32) {
    %c0_i32 = arith.constant 0 : i32
    %c0_i32_0 = arith.constant 0 : i32
    %c0_i32_1 = arith.constant 0 : i32
    return %c0_i32, %c0_i32_0 : i32, i32
  }
  func.func @transform_2(%arg0: i32) -> (i32, i32) {
    %c0_i32 = arith.constant 0 : i32
    %c0_i32_0 = arith.constant 0 : i32
    %c0_i32_1 = arith.constant 0 : i32
    return %c0_i32, %c0_i32_0 : i32, i32
  }
  func.func @transform_3(%arg0: i32) -> (i32, i32) {
    %c0_i32 = arith.constant 0 : i32
    %c0_i32_0 = arith.constant 0 : i32
    %c0_i32_1 = arith.constant 0 : i32
    return %c0_i32, %c0_i32_0 : i32, i32
  }
  func.func @transform_4(%arg0: i32) -> (i32, i32) {
    %c0_i32 = arith.constant 0 : i32
    %c0_i32_0 = arith.constant 0 : i32
    %c0_i32_1 = arith.constant 0 : i32
    return %c0_i32, %c0_i32_0 : i32, i32
  }
  func.func @transform_5(%arg0: i32) -> (i32, i32) {
    %c0_i32 = arith.constant 0 : i32
    %c0_i32_0 = arith.constant 0 : i32
    return %arg0, %c0_i32 : i32, i32
  }
}

</mosaic_0001>

<llo_original>
// kernel: feed_forward.1
$region0: #{feed_forward.1}
  #allocation0 [shape = 'u32[]', space=smem, size = 0x4, offset = 0x4, fixed_abs, tag = 'smem constant byte address 0x4 - core index']
  #allocation1 [shape = 'u32[144,128]{1,0:T(1,128)}', space=vmem, size = 0x12000, scoped, tag = 'internal scratch']
  %s0 = inlined_call_operand.vmem [shape: f32[4,128], index: 0, kind: input, shape index: {}]
  %s1 = inlined_call_operand.hbm [shape: bf16[128,512], index: 1, kind: input, shape index: {}]
  %s2 = inlined_call_operand.vmem [shape: f32[1,512], index: 2, kind: input, shape index: {}]
  %s3 = inlined_call_operand.hbm [shape: bf16[512,128], index: 3, kind: input, shape index: {}]
  %s4 = inlined_call_operand.vmem [shape: f32[1,128], index: 4, kind: input, shape index: {}]
  %s5 = inlined_call_operand.vmem [shape: f32[4,128], index: 5, kind: output, shape index: {}]
  %s6 = sld [smem:[#allocation0]]
  $region38: #{feed_forward.1} parent=0
    _
  %s8 = ssub.s32 1, %s6
  %s9 = scalar_select 0, %s8, %s6
  $region1: #{feed_forward.1} parent=0
    #allocation2 [shape = 'u8[131072]{0}', space=vmem, size = 0x20000, scoped, tag = 'input window, operand 1, single buffered']
    #allocation3 [shape = 's32[1]{0}', space=sflag, size = 0x4, scoped, tag = 'scoped memory for feed_forward.1']
    #allocation4 [shape = 'u8[131072]{0}', space=vmem, size = 0x20000, scoped, tag = 'input window, operand 3, single buffered']
    #allocation5 [shape = 's32[1]{0}', space=sflag, size = 0x4, scoped, tag = 'scoped memory for feed_forward.1']
    %10 = vsyncpa [#allocation3], 0
    %11 = vsyncpa [#allocation5], 0
    // Predicated region
    $region2: #{feed_forward.1} parent=1 // pred_check
      _
    $region3: #{feed_forward.1} parent=1 // pred_check_branch
      %13 = sbr.rel (0) target = $region5
    $region4: #{feed_forward.1} parent=1 // pred_region
      _
    $region5: #{feed_forward.1} parent=1 // pred_fallthru
      _
    // Predicated region
    $region6: #{feed_forward.1} parent=1 // pred_check
      _
    $region7: #{feed_forward.1} parent=1 // pred_check_branch
      %15 = sbr.rel (0) target = $region9
    $region8: #{feed_forward.1} parent=1 // pred_region
      %s17 = ssub.s32 4096, 4096
      %18 = vsyncadd [#allocation3], %s17
      %s19 = sshll.u32 [#allocation2], 4
      %s20 = int_to_ptr.vmem [resolvable:$true] %s19
      %25 = dma.hbm_to_vmem [thread:$0]  %s1, 4096, %s20, [#allocation3], 256, 256, 16
    $region9: #{feed_forward.1} parent=1 // pred_fallthru
      _
    // Predicated region
    $region10: #{feed_forward.1} parent=1 // pred_check
      _
    $region11: #{feed_forward.1} parent=1 // pred_check_branch
      %27 = sbr.rel (0) target = $region13
    $region12: #{feed_forward.1} parent=1 // pred_region
      _
    $region13: #{feed_forward.1} parent=1 // pred_fallthru
      _
    // Predicated region
    $region14: #{feed_forward.1} parent=1 // pred_check
      _
    $region15: #{feed_forward.1} parent=1 // pred_check_branch
      %29 = sbr.rel (0) target = $region17
    $region16: #{feed_forward.1} parent=1 // pred_region
      %s31 = ssub.s32 4096, 4096
      %32 = vsyncadd [#allocation5], %s31
      %s33 = sshll.u32 [#allocation4], 4
      %s34 = int_to_ptr.vmem [resolvable:$true] %s33
      %39 = dma.hbm_to_vmem [thread:$0]  %s3, 4096, %s34, [#allocation5], 64, 64, 4
    $region17: #{feed_forward.1} parent=1 // pred_fallthru
      _
    // Predicated region
    $region18: #{feed_forward.1} parent=1 // pred_check
      _
    $region19: #{feed_forward.1} parent=1 // pred_check_branch
      %41 = sbr.rel (0) target = $region21
    $region20: #{feed_forward.1} parent=1 // pred_region
      _
    $region21: #{feed_forward.1} parent=1 // pred_fallthru
      _
    // Predicated region
    $region22: #{feed_forward.1} parent=1 // pred_check
      _
    $region23: #{feed_forward.1} parent=1 // pred_check_branch
      %43 = sbr.rel (0) target = $region25
    $region24: #{feed_forward.1} parent=1 // pred_region
      %44 = dma.done [#allocation3], 4096
    $region25: #{feed_forward.1} parent=1 // pred_fallthru
      _
    // Predicated region
    $region26: #{feed_forward.1} parent=1 // pred_check
      _
    $region27: #{feed_forward.1} parent=1 // pred_check_branch
      %46 = sbr.rel (0) target = $region29
    $region28: #{feed_forward.1} parent=1 // pred_region
      %47 = dma.done [#allocation5], 4096
    $region29: #{feed_forward.1} parent=1 // pred_fallthru
      _
    %v49 = vld [vmem:[#allocation2] sm:$0xff]
    %v50 = vld [vmem:[#allocation2 + $0x8] sm:$0xff]
    %v51 = vld [vmem:[#allocation2 + $0x10] sm:$0xff]
    %v52 = vld [vmem:[#allocation2 + $0x18] sm:$0xff]
    %v53 = vld [vmem:[#allocation2 + $0x20] sm:$0xff]
    %v54 = vld [vmem:[#allocation2 + $0x28] sm:$0xff]
    %v55 = vld [vmem:[#allocation2 + $0x30] sm:$0xff]
    %v56 = vld [vmem:[#allocation2 + $0x38] sm:$0xff]
    %v57 = vld [vmem:[#allocation2 + $0x40] sm:$0xff]
    %v58 = vld [vmem:[#allocation2 + $0x48] sm:$0xff]
    %v59 = vld [vmem:[#allocation2 + $0x50] sm:$0xff]
    %v60 = vld [vmem:[#allocation2 + $0x58] sm:$0xff]
    %v61 = vld [vmem:[#allocation2 + $0x60] sm:$0xff]
    %v62 = vld [vmem:[#allocation2 + $0x68] sm:$0xff]
    %v63 = vld [vmem:[#allocation2 + $0x70] sm:$0xff]
    %v64 = vld [vmem:[#allocation2 + $0x78] sm:$0xff]
    %v65 = vld [vmem:[#allocation2 + $0x80] sm:$0xff]
    %v66 = vld [vmem:[#allocation2 + $0x88] sm:$0xff]
    %v67 = vld [vmem:[#allocation2 + $0x90] sm:$0xff]
    %v68 = vld [vmem:[#allocation2 + $0x98] sm:$0xff]
    %v69 = vld [vmem:[#allocation2 + $0xa0] sm:$0xff]
    %v70 = vld [vmem:[#allocation2 + $0xa8] sm:$0xff]
    %v71 = vld [vmem:[#allocation2 + $0xb0] sm:$0xff]
    %v72 = vld [vmem:[#allocation2 + $0xb8] sm:$0xff]
    %v73 = vld [vmem:[#allocation2 + $0xc0] sm:$0xff]
    %v74 = vld [vmem:[#allocation2 + $0xc8] sm:$0xff]
    %v75 = vld [vmem:[#allocation2 + $0xd0] sm:$0xff]
    %v76 = vld [vmem:[#allocation2 + $0xd8] sm:$0xff]
    %v77 = vld [vmem:[#allocation2 + $0xe0] sm:$0xff]
    %v78 = vld [vmem:[#allocation2 + $0xe8] sm:$0xff]
    %v79 = vld [vmem:[#allocation2 + $0xf0] sm:$0xff]
    %v80 = vld [vmem:[#allocation2 + $0xf8] sm:$0xff]
    %v81 = vld [vmem:[%s2] sm:$0xf]
    %v82 = vld [vmem:[#allocation4] sm:$0xf]
    %v83 = vld [vmem:[#allocation4 + $0x4] sm:$0xf]
    %v84 = vld [vmem:[#allocation4 + $0x8] sm:$0xf]
    %v85 = vld [vmem:[#allocation4 + $0xc] sm:$0xf]
    %v86 = vld [vmem:[#allocation4 + $0x10] sm:$0xf]
    %v87 = vld [vmem:[#allocation4 + $0x14] sm:$0xf]
    %v88 = vld [vmem:[#allocation4 + $0x18] sm:$0xf]
    %v89 = vld [vmem:[#allocation4 + $0x1c] sm:$0xf]
    %v90 = vld [vmem:[#allocation4 + $0x20] sm:$0xf]
    %v91 = vld [vmem:[#allocation4 + $0x24] sm:$0xf]
    %v92 = vld [vmem:[#allocation4 + $0x28] sm:$0xf]
    %v93 = vld [vmem:[#allocation4 + $0x2c] sm:$0xf]
    %v94 = vld [vmem:[#allocation4 + $0x30] sm:$0xf]
    %v95 = vld [vmem:[#allocation4 + $0x34] sm:$0xf]
    %v96 = vld [vmem:[#allocation4 + $0x38] sm:$0xf]
    %v97 = vld [vmem:[#allocation4 + $0x3c] sm:$0xf]
    %v98 = vld [vmem:[#allocation4 + $0x40] sm:$0xf]
    %v99 = vld [vmem:[#allocation4 + $0x44] sm:$0xf]
    %v100 = vld [vmem:[#allocation4 + $0x48] sm:$0xf]
    %v101 = vld [vmem:[#allocation4 + $0x4c] sm:$0xf]
    %v102 = vld [vmem:[#allocation4 + $0x50] sm:$0xf]
    %v103 = vld [vmem:[#allocation4 + $0x54] sm:$0xf]
    %v104 = vld [vmem:[#allocation4 + $0x58] sm:$0xf]
    %v105 = vld [vmem:[#allocation4 + $0x5c] sm:$0xf]
    %v106 = vld [vmem:[#allocation4 + $0x60] sm:$0xf]
    %v107 = vld [vmem:[#allocation4 + $0x64] sm:$0xf]
    %v108 = vld [vmem:[#allocation4 + $0x68] sm:$0xf]
    %v109 = vld [vmem:[#allocation4 + $0x6c] sm:$0xf]
    %v110 = vld [vmem:[#allocation4 + $0x70] sm:$0xf]
    %v111 = vld [vmem:[#allocation4 + $0x74] sm:$0xf]
    %v112 = vld [vmem:[#allocation4 + $0x78] sm:$0xf]
    %v113 = vld [vmem:[#allocation4 + $0x7c] sm:$0xf]
    %v114 = vld [vmem:[#allocation4 + $0x80] sm:$0xf]
    %v115 = vld [vmem:[#allocation4 + $0x84] sm:$0xf]
    %v116 = vld [vmem:[#allocation4 + $0x88] sm:$0xf]
    %v117 = vld [vmem:[#allocation4 + $0x8c] sm:$0xf]
    %v118 = vld [vmem:[#allocation4 + $0x90] sm:$0xf]
    %v119 = vld [vmem:[#allocation4 + $0x94] sm:$0xf]
    %v120 = vld [vmem:[#allocation4 + $0x98] sm:$0xf]
    %v121 = vld [vmem:[#allocation4 + $0x9c] sm:$0xf]
    %v122 = vld [vmem:[#allocation4 + $0xa0] sm:$0xf]
    %v123 = vld [vmem:[#allocation4 + $0xa4] sm:$0xf]
    %v124 = vld [vmem:[#allocation4 + $0xa8] sm:$0xf]
    %v125 = vld [vmem:[#allocation4 + $0xac] sm:$0xf]
    %v126 = vld [vmem:[#allocation4 + $0xb0] sm:$0xf]
    %v127 = vld [vmem:[#allocation4 + $0xb4] sm:$0xf]
    %v128 = vld [vmem:[#allocation4 + $0xb8] sm:$0xf]
    %v129 = vld [vmem:[#allocation4 + $0xbc] sm:$0xf]
    %v130 = vld [vmem:[#allocation4 + $0xc0] sm:$0xf]
    %v131 = vld [vmem:[#allocation4 + $0xc4] sm:$0xf]
    %v132 = vld [vmem:[#allocation4 + $0xc8] sm:$0xf]
    %v133 = vld [vmem:[#allocation4 + $0xcc] sm:$0xf]
    %v134 = vld [vmem:[#allocation4 + $0xd0] sm:$0xf]
    %v135 = vld [vmem:[#allocation4 + $0xd4] sm:$0xf]
    %v136 = vld [vmem:[#allocation4 + $0xd8] sm:$0xf]
    %v137 = vld [vmem:[#allocation4 + $0xdc] sm:$0xf]
    %v138 = vld [vmem:[#allocation4 + $0xe0] sm:$0xf]
    %v139 = vld [vmem:[#allocation4 + $0xe4] sm:$0xf]
    %v140 = vld [vmem:[#allocation4 + $0xe8] sm:$0xf]
    %v141 = vld [vmem:[#allocation4 + $0xec] sm:$0xf]
    %v142 = vld [vmem:[#allocation4 + $0xf0] sm:$0xf]
    %v143 = vld [vmem:[#allocation4 + $0xf4] sm:$0xf]
    %v144 = vld [vmem:[#allocation4 + $0xf8] sm:$0xf]
    %v145 = vld [vmem:[#allocation4 + $0xfc] sm:$0xf]
    %v146 = vld [vmem:[%s4] sm:$0x1]
    %v147 = vld [vmem:[%s0] sm:$0xf]
    %v148 = vpack.c.bf16 %v147, %v147
    %v150 = vlaneseq
    %v151 = vshrl.u32 %v150, 7
    %v152 = vsub.s32 0, %v151
    %v153 = vrot.slane %v81, %v152
    %v154 = vlaneseq
    %v155 = vshrl.u32 %v154, 7
    %v156 = vsub.s32 1, %v155
    %v157 = vrot.slane %v81, %v156
    %v158 = vlaneseq
    %v159 = vshrl.u32 %v158, 7
    %v160 = vsub.s32 2, %v159
    %v161 = vrot.slane %v81, %v160
    %v162 = vlaneseq
    %v163 = vshrl.u32 %v162, 7
    %v164 = vsub.s32 3, %v163
    %v165 = vrot.slane %v81, %v164
    %v202 = vunpack.c.l.b16 %v49
    %v203 = vunpack.c.h.b16 %v49
    %v204 = vunpack.c.l.b16 %v50
    %v205 = vunpack.c.h.b16 %v50
    %v206 = vunpack.c.l.b16 %v51
    %v207 = vunpack.c.h.b16 %v51
    %v208 = vunpack.c.l.b16 %v52
    %v209 = vunpack.c.h.b16 %v52
    %v210 = vunpack.c.l.b16 %v53
    %v211 = vunpack.c.h.b16 %v53
    %v212 = vunpack.c.l.b16 %v54
    %v213 = vunpack.c.h.b16 %v54
    %v214 = vunpack.c.l.b16 %v55
    %v215 = vunpack.c.h.b16 %v55
    %v216 = vunpack.c.l.b16 %v56
    %v217 = vunpack.c.h.b16 %v56
    %v218 = vunpack.c.l.b16 %v57
    %v219 = vunpack.c.h.b16 %v57
    %v220 = vunpack.c.l.b16 %v58
    %v221 = vunpack.c.h.b16 %v58
    %v222 = vunpack.c.l.b16 %v59
    %v223 = vunpack.c.h.b16 %v59
    %v224 = vunpack.c.l.b16 %v60
    %v225 = vunpack.c.h.b16 %v60
    %v226 = vunpack.c.l.b16 %v61
    %v227 = vunpack.c.h.b16 %v61
    %v228 = vunpack.c.l.b16 %v62
    %v229 = vunpack.c.h.b16 %v62
    %v230 = vunpack.c.l.b16 %v63
    %v231 = vunpack.c.h.b16 %v63
    %v232 = vunpack.c.l.b16 %v64
    %v233 = vunpack.c.h.b16 %v64
    %v234 = vunpack.c.l.b16 %v65
    %v235 = vunpack.c.h.b16 %v65
    %v236 = vunpack.c.l.b16 %v66
    %v237 = vunpack.c.h.b16 %v66
    %v238 = vunpack.c.l.b16 %v67
    %v239 = vunpack.c.h.b16 %v67
    %v240 = vunpack.c.l.b16 %v68
    %v241 = vunpack.c.h.b16 %v68
    %v242 = vunpack.c.l.b16 %v69
    %v243 = vunpack.c.h.b16 %v69
    %v244 = vunpack.c.l.b16 %v70
    %v245 = vunpack.c.h.b16 %v70
    %v246 = vunpack.c.l.b16 %v71
    %v247 = vunpack.c.h.b16 %v71
    %v248 = vunpack.c.l.b16 %v72
    %v249 = vunpack.c.h.b16 %v72
    %v250 = vunpack.c.l.b16 %v73
    %v251 = vunpack.c.h.b16 %v73
    %v252 = vunpack.c.l.b16 %v74
    %v253 = vunpack.c.h.b16 %v74
    %v254 = vunpack.c.l.b16 %v75
    %v255 = vunpack.c.h.b16 %v75
    %v256 = vunpack.c.l.b16 %v76
    %v257 = vunpack.c.h.b16 %v76
    %v258 = vunpack.c.l.b16 %v77
    %v259 = vunpack.c.h.b16 %v77
    %v260 = vunpack.c.l.b16 %v78
    %v261 = vunpack.c.h.b16 %v78
    %v262 = vunpack.c.l.b16 %v79
    %v263 = vunpack.c.h.b16 %v79
    %v264 = vunpack.c.l.b16 %v80
    %v265 = vunpack.c.h.b16 %v80
    %v266 = vpack.c.b16 %v206, %v202
    %v267 = vpack.c.b16 %v207, %v203
    %v268 = vpack.c.b16 %v208, %v204
    %v269 = vpack.c.b16 %v209, %v205
    %v270 = vpack.c.b16 %v214, %v210
    %v271 = vpack.c.b16 %v215, %v211
    %v272 = vpack.c.b16 %v216, %v212
    %v273 = vpack.c.b16 %v217, %v213
    %v274 = vpack.c.b16 %v222, %v218
    %v275 = vpack.c.b16 %v223, %v219
    %v276 = vpack.c.b16 %v224, %v220
    %v277 = vpack.c.b16 %v225, %v221
    %v278 = vpack.c.b16 %v230, %v226
    %v279 = vpack.c.b16 %v231, %v227
    %v280 = vpack.c.b16 %v232, %v228
    %v281 = vpack.c.b16 %v233, %v229
    %v282 = vpack.c.b16 %v238, %v234
    %v283 = vpack.c.b16 %v239, %v235
    %v284 = vpack.c.b16 %v240, %v236
    %v285 = vpack.c.b16 %v241, %v237
    %v286 = vpack.c.b16 %v246, %v242
    %v287 = vpack.c.b16 %v247, %v243
    %v288 = vpack.c.b16 %v248, %v244
    %v289 = vpack.c.b16 %v249, %v245
    %v290 = vpack.c.b16 %v254, %v250
    %v291 = vpack.c.b16 %v255, %v251
    %v292 = vpack.c.b16 %v256, %v252
    %v293 = vpack.c.b16 %v257, %v253
    %v294 = vpack.c.b16 %v262, %v258
    %v295 = vpack.c.b16 %v263, %v259
    %v296 = vpack.c.b16 %v264, %v260
    %v297 = vpack.c.b16 %v265, %v261
    %330 = vmatprep.subr.bf16.mxu0 %v267
    %331 = vmatpush1.bf16.msra.mxu0 %v266
    %332 = vmatprep.subr.bf16.mxu0 %v271
    %333 = vmatpush1.bf16.msra.mxu0 %v270
    %334 = vmatprep.subr.bf16.mxu0 %v275
    %335 = vmatpush1.bf16.msra.mxu0 %v274
    %336 = vmatprep.subr.bf16.mxu0 %v279
    %337 = vmatpush1.bf16.msra.mxu0 %v278
    %338 = vmatprep.subr.bf16.mxu0 %v283
    %339 = vmatpush1.bf16.msra.mxu0 %v282
    %340 = vmatprep.subr.bf16.mxu0 %v287
    %341 = vmatpush1.bf16.msra.mxu0 %v286
    %342 = vmatprep.subr.bf16.mxu0 %v291
    %343 = vmatpush1.bf16.msra.mxu0 %v290
    %344 = vmatprep.subr.bf16.mxu0 %v295
    %345 = vmatpush1.bf16.msra.mxu0 %v294
    %346 = vmatprep.subr.bf16.mxu0 0
    %347 = vmatpush1.bf16.msra.mxu0 0
    %348 = vmatprep.subr.bf16.mxu0 0
    %349 = vmatpush1.bf16.msra.mxu0 0
    %350 = vmatprep.subr.bf16.mxu0 0
    %351 = vmatpush1.bf16.msra.mxu0 0
    %352 = vmatprep.subr.bf16.mxu0 0
    %353 = vmatpush1.bf16.msra.mxu0 0
    %354 = vmatprep.subr.bf16.mxu0 0
    %355 = vmatpush1.bf16.msra.mxu0 0
    %356 = vmatprep.subr.bf16.mxu0 0
    %357 = vmatpush1.bf16.msra.mxu0 0
    %358 = vmatprep.subr.bf16.mxu0 0
    %359 = vmatpush1.bf16.msra.mxu0 0
    %360 = vmatprep.subr.bf16.mxu0 0
    %361 = vmatpush1.bf16.msra.mxu0 0
    %362 = vmatprep.mubr.bf16.mxu0 0
    %363 = vmatmul.mubr.bf16.gmra.mrb[0].mxu0 %v148
    %v364 = vpop.f32.mrb[0].mxu0
    %v365 = vadd.f32 %v153, %v364
    %v366 = vpop.f32.mrb[0].mxu0
    %v367 = vadd.f32 %v157, %v366
    %v368 = vpop.f32.mrb[0].mxu0
    %v369 = vpop.f32.mrb[0].mxu0
    %370 = vdwg.mxu0
    %371 = vmatprep.subr.bf16.mxu0 %v269
    %372 = vmatpush1.bf16.msra.mxu0 %v268
    %373 = vmatprep.subr.bf16.mxu0 %v273
    %374 = vmatpush1.bf16.msra.mxu0 %v272
    %375 = vmatprep.subr.bf16.mxu0 %v277
    %376 = vmatpush1.bf16.msra.mxu0 %v276
    %377 = vmatprep.subr.bf16.mxu0 %v281
    %378 = vmatpush1.bf16.msra.mxu0 %v280
    %379 = vmatprep.subr.bf16.mxu0 %v285
    %380 = vmatpush1.bf16.msra.mxu0 %v284
    %381 = vmatprep.subr.bf16.mxu0 %v289
    %382 = vmatpush1.bf16.msra.mxu0 %v288
    %383 = vmatprep.subr.bf16.mxu0 %v293
    %384 = vmatpush1.bf16.msra.mxu0 %v292
    %385 = vmatprep.subr.bf16.mxu0 %v297
    %386 = vmatpush1.bf16.msra.mxu0 %v296
    %387 = vmatprep.subr.bf16.mxu0 0
    %388 = vmatpush1.bf16.msra.mxu0 0
    %389 = vmatprep.subr.bf16.mxu0 0
    %390 = vmatpush1.bf16.msra.mxu0 0
    %391 = vmatprep.subr.bf16.mxu0 0
    %392 = vmatpush1.bf16.msra.mxu0 0
    %393 = vmatprep.subr.bf16.mxu0 0
    %394 = vmatpush1.bf16.msra.mxu0 0
    %395 = vmatprep.subr.bf16.mxu0 0
    %396 = vmatpush1.bf16.msra.mxu0 0
    %397 = vmatprep.subr.bf16.mxu0 0
    %398 = vmatpush1.bf16.msra.mxu0 0
    %399 = vmatprep.subr.bf16.mxu0 0
    %400 = vmatpush1.bf16.msra.mxu0 0
    %401 = vmatprep.subr.bf16.mxu0 0
    %402 = vmatpush1.bf16.msra.mxu0 0
    %403 = vmatprep.mubr.bf16.mxu0 0
    %404 = vmatmul.mubr.bf16.gmra.mrb[0].mxu0 %v148
    %v405 = vpop.f32.mrb[0].mxu0
    %v406 = vadd.f32 %v161, %v405
    %v407 = vpop.f32.mrb[0].mxu0
    %v408 = vadd.f32 %v165, %v407
    %v409 = vpop.f32.mrb[0].mxu0
    %v410 = vpop.f32.mrb[0].mxu0
    %411 = vdwg.mxu0
    %v412 = vmax.f32 %v365, 0.0
    %v413 = vmax.f32 %v367, 0.0
    %v414 = vmax.f32 %v406, 0.0
    %v415 = vmax.f32 %v408, 0.0
    %v416 = vpack.c.bf16 %v412, %v412
    %v417 = vpack.c.bf16 %v413, %v413
    %v418 = vpack.c.bf16 %v414, %v414
    %v419 = vpack.c.bf16 %v415, %v415
    %v421 = vlaneseq
    %v422 = vshrl.u32 %v421, 7
    %v423 = vsub.s32 0, %v422
    %v424 = vrot.slane %v146, %v423
    %v490 = vunpack.c.l.b16 %v82
    %v491 = vunpack.c.l.b16 %v83
    %v492 = vunpack.c.l.b16 %v84
    %v493 = vunpack.c.l.b16 %v85
    %v494 = vunpack.c.l.b16 %v86
    %v495 = vunpack.c.l.b16 %v87
    %v496 = vunpack.c.l.b16 %v88
    %v497 = vunpack.c.l.b16 %v89
    %v498 = vunpack.c.l.b16 %v90
    %v499 = vunpack.c.l.b16 %v91
    %v500 = vunpack.c.l.b16 %v92
    %v501 = vunpack.c.l.b16 %v93
    %v502 = vunpack.c.l.b16 %v94
    %v503 = vunpack.c.l.b16 %v95
    %v504 = vunpack.c.l.b16 %v96
    %v505 = vunpack.c.l.b16 %v97
    %v506 = vunpack.c.l.b16 %v98
    %v507 = vunpack.c.l.b16 %v99
    %v508 = vunpack.c.l.b16 %v100
    %v509 = vunpack.c.l.b16 %v101
    %v510 = vunpack.c.l.b16 %v102
    %v511 = vunpack.c.l.b16 %v103
    %v512 = vunpack.c.l.b16 %v104
    %v513 = vunpack.c.l.b16 %v105
    %v514 = vunpack.c.l.b16 %v106
    %v515 = vunpack.c.l.b16 %v107
    %v516 = vunpack.c.l.b16 %v108
    %v517 = vunpack.c.l.b16 %v109
    %v518 = vunpack.c.l.b16 %v110
    %v519 = vunpack.c.l.b16 %v111
    %v520 = vunpack.c.l.b16 %v112
    %v521 = vunpack.c.l.b16 %v113
    %v522 = vunpack.c.l.b16 %v114
    %v523 = vunpack.c.l.b16 %v115
    %v524 = vunpack.c.l.b16 %v116
    %v525 = vunpack.c.l.b16 %v117
    %v526 = vunpack.c.l.b16 %v118
    %v527 = vunpack.c.l.b16 %v119
    %v528 = vunpack.c.l.b16 %v120
    %v529 = vunpack.c.l.b16 %v121
    %v530 = vunpack.c.l.b16 %v122
    %v531 = vunpack.c.l.b16 %v123
    %v532 = vunpack.c.l.b16 %v124
    %v533 = vunpack.c.l.b16 %v125
    %v534 = vunpack.c.l.b16 %v126
    %v535 = vunpack.c.l.b16 %v127
    %v536 = vunpack.c.l.b16 %v128
    %v537 = vunpack.c.l.b16 %v129
    %v538 = vunpack.c.l.b16 %v130
    %v539 = vunpack.c.l.b16 %v131
    %v540 = vunpack.c.l.b16 %v132
    %v541 = vunpack.c.l.b16 %v133
    %v542 = vunpack.c.l.b16 %v134
    %v543 = vunpack.c.l.b16 %v135
    %v544 = vunpack.c.l.b16 %v136
    %v545 = vunpack.c.l.b16 %v137
    %v546 = vunpack.c.l.b16 %v138
    %v547 = vunpack.c.l.b16 %v139
    %v548 = vunpack.c.l.b16 %v140
    %v549 = vunpack.c.l.b16 %v141
    %v550 = vunpack.c.l.b16 %v142
    %v551 = vunpack.c.l.b16 %v143
    %v552 = vunpack.c.l.b16 %v144
    %v553 = vunpack.c.l.b16 %v145
    %v554 = vpack.c.b16 %v491, %v490
    %v555 = vpack.c.b16 %v493, %v492
    %v556 = vpack.c.b16 %v495, %v494
    %v557 = vpack.c.b16 %v497, %v496
    %v558 = vpack.c.b16 %v499, %v498
    %v559 = vpack.c.b16 %v501, %v500
    %v560 = vpack.c.b16 %v503, %v502
    %v561 = vpack.c.b16 %v505, %v504
    %v562 = vpack.c.b16 %v507, %v506
    %v563 = vpack.c.b16 %v509, %v508
    %v564 = vpack.c.b16 %v511, %v510
    %v565 = vpack.c.b16 %v513, %v512
    %v566 = vpack.c.b16 %v515, %v514
    %v567 = vpack.c.b16 %v517, %v516
    %v568 = vpack.c.b16 %v519, %v518
    %v569 = vpack.c.b16 %v521, %v520
    %v570 = vpack.c.b16 %v523, %v522
    %v571 = vpack.c.b16 %v525, %v524
    %v572 = vpack.c.b16 %v527, %v526
    %v573 = vpack.c.b16 %v529, %v528
    %v574 = vpack.c.b16 %v531, %v530
    %v575 = vpack.c.b16 %v533, %v532
    %v576 = vpack.c.b16 %v535, %v534
    %v577 = vpack.c.b16 %v537, %v536
    %v578 = vpack.c.b16 %v539, %v538
    %v579 = vpack.c.b16 %v541, %v540
    %v580 = vpack.c.b16 %v543, %v542
    %v581 = vpack.c.b16 %v545, %v544
    %v582 = vpack.c.b16 %v547, %v546
    %v583 = vpack.c.b16 %v549, %v548
    %v584 = vpack.c.b16 %v551, %v550
    %v585 = vpack.c.b16 %v553, %v552
    %618 = vmatprep.subr.bf16.mxu0 0
    %619 = vmatpush1.bf16.msra.mxu0 %v554
    %620 = vmatprep.subr.bf16.mxu0 0
    %621 = vmatpush1.bf16.msra.mxu0 %v555
    %622 = vmatprep.subr.bf16.mxu0 0
    %623 = vmatpush1.bf16.msra.mxu0 %v556
    %624 = vmatprep.subr.bf16.mxu0 0
    %625 = vmatpush1.bf16.msra.mxu0 %v557
    %626 = vmatprep.subr.bf16.mxu0 0
    %627 = vmatpush1.bf16.msra.mxu0 %v558
    %628 = vmatprep.subr.bf16.mxu0 0
    %629 = vmatpush1.bf16.msra.mxu0 %v559
    %630 = vmatprep.subr.bf16.mxu0 0
    %631 = vmatpush1.bf16.msra.mxu0 %v560
    %632 = vmatprep.subr.bf16.mxu0 0
    %633 = vmatpush1.bf16.msra.mxu0 %v561
    %634 = vmatprep.subr.bf16.mxu0 0
    %635 = vmatpush1.bf16.msra.mxu0 %v562
    %636 = vmatprep.subr.bf16.mxu0 0
    %637 = vmatpush1.bf16.msra.mxu0 %v563
    %638 = vmatprep.subr.bf16.mxu0 0
    %639 = vmatpush1.bf16.msra.mxu0 %v564
    %640 = vmatprep.subr.bf16.mxu0 0
    %641 = vmatpush1.bf16.msra.mxu0 %v565
    %642 = vmatprep.subr.bf16.mxu0 0
    %643 = vmatpush1.bf16.msra.mxu0 %v566
    %644 = vmatprep.subr.bf16.mxu0 0
    %645 = vmatpush1.bf16.msra.mxu0 %v567
    %646 = vmatprep.subr.bf16.mxu0 0
    %647 = vmatpush1.bf16.msra.mxu0 %v568
    %648 = vmatprep.subr.bf16.mxu0 0
    %649 = vmatpush1.bf16.msra.mxu0 %v569
    %650 = vmatprep.mubr.bf16.mxu0 %v417
    %651 = vmatmul.mubr.bf16.gmra.mrb[0].mxu0 %v416
    %v652 = vpop.f32.mrb[0].mxu0
    %v653 = vadd.f32 %v424, %v652
    %v654 = vpop.f32.mrb[0].mxu0
    %v655 = vpop.f32.mrb[0].mxu0
    %v656 = vpop.f32.mrb[0].mxu0
    %657 = vdwg.mxu0
    %658 = vmatprep.subr.bf16.mxu0 0
    %659 = vmatpush1.bf16.msra.mxu0 %v570
    %660 = vmatprep.subr.bf16.mxu0 0
    %661 = vmatpush1.bf16.msra.mxu0 %v571
    %662 = vmatprep.subr.bf16.mxu0 0
    %663 = vmatpush1.bf16.msra.mxu0 %v572
    %664 = vmatprep.subr.bf16.mxu0 0
    %665 = vmatpush1.bf16.msra.mxu0 %v573
    %666 = vmatprep.subr.bf16.mxu0 0
    %667 = vmatpush1.bf16.msra.mxu0 %v574
    %668 = vmatprep.subr.bf16.mxu0 0
    %669 = vmatpush1.bf16.msra.mxu0 %v575
    %670 = vmatprep.subr.bf16.mxu0 0
    %671 = vmatpush1.bf16.msra.mxu0 %v576
    %672 = vmatprep.subr.bf16.mxu0 0
    %673 = vmatpush1.bf16.msra.mxu0 %v577
    %674 = vmatprep.subr.bf16.mxu0 0
    %675 = vmatpush1.bf16.msra.mxu0 %v578
    %676 = vmatprep.subr.bf16.mxu0 0
    %677 = vmatpush1.bf16.msra.mxu0 %v579
    %678 = vmatprep.subr.bf16.mxu0 0
    %679 = vmatpush1.bf16.msra.mxu0 %v580
    %680 = vmatprep.subr.bf16.mxu0 0
    %681 = vmatpush1.bf16.msra.mxu0 %v581
    %682 = vmatprep.subr.bf16.mxu0 0
    %683 = vmatpush1.bf16.msra.mxu0 %v582
    %684 = vmatprep.subr.bf16.mxu0 0
    %685 = vmatpush1.bf16.msra.mxu0 %v583
    %686 = vmatprep.subr.bf16.mxu0 0
    %687 = vmatpush1.bf16.msra.mxu0 %v584
    %688 = vmatprep.subr.bf16.mxu0 0
    %689 = vmatpush1.bf16.msra.mxu0 %v585
    %690 = vmatprep.mubr.bf16.mxu0 %v419
    %691 = vmatmul.mubr.bf16.gmra.mrb[0].mxu0 %v418
    %v692 = vpop.f32.mrb[0].mxu0
    %v693 = vadd.f32 %v653, %v692
    %v694 = vpop.f32.mrb[0].mxu0
    %v695 = vpop.f32.mrb[0].mxu0
    %v696 = vpop.f32.mrb[0].mxu0
    %697 = vdwg.mxu0
    %698 = vst [vmem:[%s5] sm:$0xf] %v693
    // Predicated region
    $region30: #{feed_forward.1} parent=1 // pred_check
      _
    $region31: #{feed_forward.1} parent=1 // pred_check_branch
      %700 = sbr.rel (0) target = $region33
    $region32: #{feed_forward.1} parent=1 // pred_region
      _
    $region33: #{feed_forward.1} parent=1 // pred_fallthru
      _
    // Predicated region
    $region34: #{feed_forward.1} parent=1 // pred_check
      _
    $region35: #{feed_forward.1} parent=1 // pred_check_branch
      %702 = sbr.rel (0) target = $region37
    $region36: #{feed_forward.1} parent=1 // pred_region
      _
    $region37: #{feed_forward.1} parent=1 // pred_fallthru
      _
    %703 = vsyncpa [#allocation3], 1
    %704 = vsyncpa [#allocation5], 1

</llo_original>
